<compile_context>
chip_gen: v5e
topology: v5e:2x2
jax: 0.10.0
libtpu: 0.0.40
codegen_flags: <defaults>
</compile_context>

<pallas_src>
import functools

import jax
import jax.numpy as jnp
from jax import lax
from jax.experimental import pallas as pl
from jax.experimental.pallas import tpu as pltpu

VERY_NEGATIVE_NUMBER = -1e30

_SUBLANES = 8    # f32 sublane count
_LANES = 128     # lane count


def _round_up(x, m):
    return (x + m - 1) // m * m


# ----------------------------------------------------------------------------
# Fused kernel (one time-chunk per grid step): input projection + LSTM
# recurrence + length-masked max-pool; classifier matmul on the last chunk.
# ----------------------------------------------------------------------------
def lstm_chunk_kernel(emb_ref, wih_ref, whh_ref, bias_ref, len_ref,
                      wout_ref, bout_ref, out_ref,
                      xg_ref, h_ref, c_ref, m_ref, *, T_CHUNK, B, H):
    tc = pl.program_id(0)

    # ---- init carried state at the first time chunk.
    @pl.when(tc == 0)
    def _init():
        h_ref[...] = jnp.zeros_like(h_ref)
        c_ref[...] = jnp.zeros_like(c_ref)
        m_ref[...] = jnp.full_like(m_ref, VERY_NEGATIVE_NUMBER)

    # ---- Phase 1: input projection for the whole chunk, off the serial path.
    # (T_CHUNK*B, E)bf16 @ (E, 4H)bf16 -> f32, + fused bias.  Written to VMEM
    # scratch so the recurrence loop only keeps a (B,4H) slice live per step.
    xg_ref[...] = (jnp.dot(emb_ref[...], wih_ref[...],
                           preferred_element_type=jnp.float32)
                   + bias_ref[...])

    whh = whh_ref[...]            # (H, 4H) f32, loop-invariant fused RHS
    lens = len_ref[...]           # (B, 1) int32 valid lengths
    t_base = tc * T_CHUNK         # global time offset of this chunk

    # ---- Phase 2: serial LSTM recurrence + running length-masked max-pool.
    def step(t, carry):
        h, c, m = carry
        start = pl.multiple_of(t * B, B)      # sublane-aligned chunk row
        # ONE fused recurrent matmul per step; gate order i, f, g, o (PyTorch).
        gates = xg_ref[pl.ds(start, B), :] + jnp.dot(
            h, whh, preferred_element_type=jnp.float32)        # (B, 4H)
        sig = jax.nn.sigmoid(gates)           # one dense 128-lane EUP pass
        tan = jnp.tanh(gates)                 # one dense 128-lane EUP pass
        i_g = sig[:, 0 * H:1 * H]
        f_g = sig[:, 1 * H:2 * H]
        g_g = tan[:, 2 * H:3 * H]
        o_g = sig[:, 3 * H:4 * H]
        c = f_g * c + i_g * g_g
        h = o_g * jnp.tanh(c)
        # exp-mask + max-over-time, without any (T,B,H) mask tensor:
        # positions with global t >= length never enter the max.
        valid = lens > (t_base + t)           # (B, 1) bool
        m = jnp.where(valid, jnp.maximum(m, h), m)
        return h, c, m

    h, c, m = lax.fori_loop(0, T_CHUNK, step,
                            (h_ref[...], c_ref[...], m_ref[...]),
                            unroll=True)
    h_ref[...] = h
    c_ref[...] = c
    m_ref[...] = m

    # ---- Phase 3: classifier on the last chunk; (B, C_pad) = (8, 128)
    # lane-dense single store.
    @pl.when(tc == pl.num_programs(0) - 1)
    def _finalize():
        out_ref[...] = (jnp.dot(m, wout_ref[...],
                                preferred_element_type=jnp.float32)
                        + bout_ref[...])


# ----------------------------------------------------------------------------
# Parameter preparation (PyTorch layout -> kernel layout).  Done once.
# ----------------------------------------------------------------------------
def prepare_params(raw):
    w_ih = raw["w_ih"]        # (4H, E), gate order i,f,g,o
    w_hh = raw["w_hh"]        # (4H, H)
    w_out = raw["w_out"]      # (C, H)
    b_out = raw["b_out"]      # (C,)
    H = w_hh.shape[1]
    C = w_out.shape[0]
    C_pad = _round_up(C, _LANES)

    wout_t = jnp.zeros((H, C_pad), jnp.float32).at[:, :C].set(w_out.T)
    bout = jnp.zeros((1, C_pad), jnp.float32).at[0, :C].set(b_out)

    return {
        # bf16 for the throughput matmul path (table gather + X @ W_ih).
        "embed": raw["embed"].astype(jnp.bfloat16),                  # (V, E)
        "wih_t": w_ih.T.astype(jnp.bfloat16),                        # (E, 4H)
        # Fused recurrent weight: a single (H, 4H) matrix, f32.
        "whh_t": w_hh.T.astype(jnp.float32),                         # (H, 4H)
        "bias": (raw["b_ih"] + raw["b_hh"]).reshape(1, 4 * H).astype(
            jnp.float32),                                            # (1, 4H)
        "wout_t": wout_t,                                            # (H, C_pad)
        "bout": bout,                                                # (1, C_pad)
    }


# ----------------------------------------------------------------------------
# Full forward pass.  Glue (token padding, embedding gather, length derivation)
# is plain JAX; the whole LSTM -> pool -> classifier hot path is one kernel.
# ----------------------------------------------------------------------------
@functools.partial(jax.jit, static_argnames=("nclasses", "t_chunk"))
def model_forward(tokens, mask, params, nclasses, t_chunk=4):
    T, B = tokens.shape
    E = params["embed"].shape[1]
    H = params["whh_t"].shape[0]
    C_pad = params["wout_t"].shape[1]
    B_pad = _round_up(B, _SUBLANES)
    T_pad = _round_up(T, t_chunk)
    n_chunks = T_pad // t_chunk

    # Pad tokens (index 0), not the gathered embeddings: no extra full
    # (T, B_pad, E) HBM write+read.  Padded rows/steps are masked out of the
    # max (or sliced away), so their contents never matter.
    # TODO(synk): at realistic vocab/seq sizes, fuse the gather into the kernel
    # via scalar-prefetched token ids + pl.Element row gather; not worth it here.
    tokens_p = jnp.zeros((T_pad, B_pad), tokens.dtype).at[:T, :B].set(tokens)
    emb2d = params["embed"][tokens_p].reshape(T_pad * B_pad, E)      # bf16

    # Per-row valid lengths; padded batch rows get full validity (finite,
    # sliced away below).  Replaces the (T*B_pad, H) additive mask tensor.
    lengths = jnp.sum(mask[:, :, 0], axis=0).astype(jnp.int32)       # (B,)
    len_p = jnp.full((B_pad, 1), T_pad, jnp.int32).at[:B, 0].set(lengths)

    grid_spec = pltpu.PrefetchScalarGridSpec(
        num_scalar_prefetch=0,
        grid=(n_chunks,),
        in_specs=[
            # time-chunked, pipelined embedding slab
            pl.BlockSpec((t_chunk * B_pad, E), lambda t: (t, 0)),
            # resident weights / lengths (constant block index)
            pl.BlockSpec((E, 4 * H), lambda t: (0, 0)),
            pl.BlockSpec((H, 4 * H), lambda t: (0, 0)),
            pl.BlockSpec((1, 4 * H), lambda t: (0, 0)),
            pl.BlockSpec((B_pad, 1), lambda t: (0, 0)),
            pl.BlockSpec((H, C_pad), lambda t: (0, 0)),
            pl.BlockSpec((1, C_pad), lambda t: (0, 0)),
        ],
        out_specs=pl.BlockSpec((B_pad, C_pad), lambda t: (0, 0)),
        scratch_shapes=[
            pltpu.VMEM((t_chunk * B_pad, 4 * H), jnp.float32),  # xg chunk
            pltpu.VMEM((B_pad, H), jnp.float32),                # h
            pltpu.VMEM((B_pad, H), jnp.float32),                # c
            pltpu.VMEM((B_pad, H), jnp.float32),                # running max
        ],
    )

    out = pl.pallas_call(
        functools.partial(lstm_chunk_kernel, T_CHUNK=t_chunk, B=B_pad, H=H),
        out_shape=jax.ShapeDtypeStruct((B_pad, C_pad), jnp.float32),
        grid_spec=grid_spec,
        compiler_params=pltpu.CompilerParams(
            dimension_semantics=("arbitrary",),
            vmem_limit_bytes=64 * 1024 * 1024),
    )(emb2d, params["wih_t"], params["whh_t"], params["bias"], len_p,
      params["wout_t"], params["bout"])

    return out[:B, :nclasses]


# ----------------------------------------------------------------------------
# Pure-JAX f32 reference reproducing the PyTorch forward semantics.
# ----------------------------------------------------------------------------
def reference_forward(tokens, mask, raw):
    emb = raw["embed"][tokens]                                   # (T, B, E)
    T, B, _ = emb.shape
    H = raw["w_hh"].shape[1]
    w_ih_t = raw["w_ih"].T
    w_hh_t = raw["w_hh"].T
    b = raw["b_ih"] + raw["b_hh"]

    def step(carry, x_t):
        h, c = carry
        gates = x_t @ w_ih_t + h @ w_hh_t + b
        i = jax.nn.sigmoid(gates[:, 0 * H:1 * H])
        f = jax.nn.sigmoid(gates[:, 1 * H:2 * H])
        g = jnp.tanh(gates[:, 2 * H:3 * H])
        o = jax.nn.sigmoid(gates[:, 3 * H:4 * H])
        c = f * c + i * g
        h = o * jnp.tanh(c)
        return (h, c), h

    init = (jnp.zeros((B, H), jnp.float32), jnp.zeros((B, H), jnp.float32))
    (_, _), hs = jax.lax.scan(step, init, emb)
    masked = hs + (1.0 - mask) * VERY_NEGATIVE_NUMBER
    pooled = jnp.max(masked, axis=0)                             # (B, H)
    return pooled @ raw["w_out"].T + raw["b_out"]


if __name__ == "__main__":
    # Small, TPU-friendly shapes consistent with the module.
    VOCAB, EMB, HIDDEN, NCLASSES = 50, 32, 32, 5
    T, B = 8, 2

    key = jax.random.PRNGKey(0)
    ks = jax.random.split(key, 8)

    raw = {
        # nn.Embedding(len(vocab), emb_dim)
        "embed": jax.random.normal(ks[0], (VOCAB, EMB), jnp.float32) * 0.1,
        # nn.LSTM(emb_dim, hidden, 1): weight_ih (4H,E), weight_hh (4H,H),
        # bias_ih (4H,), bias_hh (4H,)
        "w_ih": jax.random.normal(ks[1], (4 * HIDDEN, EMB), jnp.float32) * 0.1,
        "w_hh": jax.random.normal(ks[2], (4 * HIDDEN, HIDDEN), jnp.float32) * 0.1,
        "b_ih": jax.random.normal(ks[3], (4 * HIDDEN,), jnp.float32) * 0.1,
        "b_hh": jax.random.normal(ks[4], (4 * HIDDEN,), jnp.float32) * 0.1,
        # nn.Linear(hidden, nclasses): weight (C,H), bias (C,)
        "w_out": jax.random.normal(ks[5], (NCLASSES, HIDDEN), jnp.float32) * 0.1,
        "b_out": jax.random.normal(ks[6], (NCLASSES,), jnp.float32) * 0.1,
    }
    params = prepare_params(raw)

    tokens = jax.random.randint(ks[7], (T, B), 0, VOCAB, dtype=jnp.int32)
    lengths = jnp.array([T, 5], dtype=jnp.int32)     # descending, all >= 1
    # create_mask: (T, B) with 1.0 for t < length, 0.0 after; viewed (T, B, 1)
    mask = (jnp.arange(T)[:, None] < lengths[None, :]).astype(
        jnp.float32)[:, :, None]

    logits = model_forward(tokens, mask, params, NCLASSES, t_chunk=4)
    jax.block_until_ready(logits)

    ref = reference_forward(tokens, mask, raw)
    assert logits.shape == (B, NCLASSES)
    # Tolerance accounts for the bf16 embedding/W_ih input projection
    # (recurrence, pooling and classifier stay f32).
    assert jnp.allclose(logits, ref, rtol=2e-3, atol=2e-3), (
        f"mismatch:\n{logits}\nvs\n{ref}")

    print("KERNEL_OK")
</pallas_src>

<mosaic_0001>
module attributes {stable_mosaic.version = 11 : i64} {
  func.func @lstm_chunk_kernel(%arg0: i32, %arg1: memref<32x32xbf16, #tpu.memory_space<vmem>>, %arg2: memref<32x128xbf16, #tpu.memory_space<vmem>>, %arg3: memref<32x128xf32, #tpu.memory_space<vmem>>, %arg4: memref<1x128xf32, #tpu.memory_space<vmem>>, %arg5: memref<8x1xi32, #tpu.memory_space<vmem>>, %arg6: memref<32x128xf32, #tpu.memory_space<vmem>>, %arg7: memref<1x128xf32, #tpu.memory_space<vmem>>, %arg8: memref<8x128xf32, #tpu.memory_space<vmem>>, %arg9: memref<32x128xf32, #tpu.memory_space<vmem>>, %arg10: memref<8x32xf32, #tpu.memory_space<vmem>>, %arg11: memref<8x32xf32, #tpu.memory_space<vmem>>, %arg12: memref<8x32xf32, #tpu.memory_space<vmem>>) attributes {dimension_semantics = [#tpu.dimension_semantics<arbitrary>], iteration_bounds = array<i64: 2>, scalar_prefetch = 0 : i64, scratch_operands = 4 : i64, tpu.core_type = #tpu.core_type<tc>, window_params = [{transform_indices = @transform_0, window_bounds = array<i64: 32, 32>}, {pipeline_mode = #tpu.pipeline_mode<synchronous>, transform_indices = @transform_1, window_bounds = array<i64: 32, 128>}, {pipeline_mode = #tpu.pipeline_mode<synchronous>, transform_indices = @transform_2, window_bounds = array<i64: 32, 128>}, {pipeline_mode = #tpu.pipeline_mode<synchronous>, transform_indices = @transform_3, window_bounds = array<i64: 1, 128>}, {pipeline_mode = #tpu.pipeline_mode<synchronous>, transform_indices = @transform_4, window_bounds = array<i64: 8, 1>}, {pipeline_mode = #tpu.pipeline_mode<synchronous>, transform_indices = @transform_5, window_bounds = array<i64: 32, 128>}, {pipeline_mode = #tpu.pipeline_mode<synchronous>, transform_indices = @transform_6, window_bounds = array<i64: 1, 128>}, {pipeline_mode = #tpu.pipeline_mode<synchronous>, transform_indices = @transform_7, window_bounds = array<i64: 8, 128>}]} {
    %c0_i32 = arith.constant 0 : i32
    %0 = arith.cmpi eq, %arg0, %c0_i32 : i32
    %1 = arith.extui %0 : i1 to i32
    %c0_i32_0 = arith.constant 0 : i32
    %2 = arith.cmpi ne, %1, %c0_i32_0 : i32
    scf.if %2 {
      %cst_43 = arith.constant 0.000000e+00 : f32
      %134 = vector.broadcast %cst_43 : f32 to vector<8x32xf32>
      %c0_44 = arith.constant 0 : index
      %c0_45 = arith.constant 0 : index
      %135 = vector.load %arg10[%c0_44, %c0_45] : memref<8x32xf32, #tpu.memory_space<vmem>>, vector<8x32xf32>
      tpu.vector_store %arg10[%c0_44, %c0_45], %134 {strides = array<i32>} : memref<8x32xf32, #tpu.memory_space<vmem>>, vector<8x32xf32>,
      %cst_46 = arith.constant 0.000000e+00 : f32
      %136 = vector.broadcast %cst_46 : f32 to vector<8x32xf32>
      %c0_47 = arith.constant 0 : index
      %c0_48 = arith.constant 0 : index
      %137 = vector.load %arg11[%c0_47, %c0_48] : memref<8x32xf32, #tpu.memory_space<vmem>>, vector<8x32xf32>
      tpu.vector_store %arg11[%c0_47, %c0_48], %136 {strides = array<i32>} : memref<8x32xf32, #tpu.memory_space<vmem>>, vector<8x32xf32>,
      %cst_49 = arith.constant -1.000000e+30 : f32
      %138 = vector.broadcast %cst_49 : f32 to vector<8x32xf32>
      %c0_50 = arith.constant 0 : index
      %c0_51 = arith.constant 0 : index
      %139 = vector.load %arg12[%c0_50, %c0_51] : memref<8x32xf32, #tpu.memory_space<vmem>>, vector<8x32xf32>
      tpu.vector_store %arg12[%c0_50, %c0_51], %138 {strides = array<i32>} : memref<8x32xf32, #tpu.memory_space<vmem>>, vector<8x32xf32>,
    } else {
    }
    %c0 = arith.constant 0 : index
    %c0_1 = arith.constant 0 : index
    %3 = vector.load %arg1[%c0, %c0_1] : memref<32x32xbf16, #tpu.memory_space<vmem>>, vector<32x32xbf16>
    %c0_2 = arith.constant 0 : index
    %c0_3 = arith.constant 0 : index
    %4 = vector.load %arg2[%c0_2, %c0_3] : memref<32x128xbf16, #tpu.memory_space<vmem>>, vector<32x128xbf16>
    %cst = arith.constant dense<0.000000e+00> : vector<32x128xf32>
    %5 = tpu.matmul %3, %4, %cst {dimension_numbers = #tpu.dot_dimension_numbers<[1], [0], [0], [1], [0, 0, 1, 1], [], []>} : vector<32x32xbf16>, vector<32x128xbf16>, vector<32x128xf32> -> vector<32x128xf32>
    %c0_4 = arith.constant 0 : index
    %c0_5 = arith.constant 0 : index
    %6 = vector.load %arg4[%c0_4, %c0_5] : memref<1x128xf32, #tpu.memory_space<vmem>>, vector<1x128xf32>
    %7 = vector.broadcast %6 : vector<1x128xf32> to vector<32x128xf32>
    %8 = arith.addf %5, %7 : vector<32x128xf32>
    %c0_6 = arith.constant 0 : index
    %c0_7 = arith.constant 0 : index
    %9 = vector.load %arg9[%c0_6, %c0_7] : memref<32x128xf32, #tpu.memory_space<vmem>>, vector<32x128xf32>
    tpu.vector_store %arg9[%c0_6, %c0_7], %8 {strides = array<i32>} : memref<32x128xf32, #tpu.memory_space<vmem>>, vector<32x128xf32>,
    %c0_8 = arith.constant 0 : index
    %c0_9 = arith.constant 0 : index
    %10 = vector.load %arg3[%c0_8, %c0_9] : memref<32x128xf32, #tpu.memory_space<vmem>>, vector<32x128xf32>
    %c0_10 = arith.constant 0 : index
    %c0_11 = arith.constant 0 : index
    %11 = vector.load %arg5[%c0_10, %c0_11] : memref<8x1xi32, #tpu.memory_space<vmem>>, vector<8x1xi32>
    %c4_i32 = arith.constant 4 : i32
    %12 = arith.muli %arg0, %c4_i32 : i32
    %c0_12 = arith.constant 0 : index
    %c0_13 = arith.constant 0 : index
    %13 = vector.load %arg10[%c0_12, %c0_13] : memref<8x32xf32, #tpu.memory_space<vmem>>, vector<8x32xf32>
    %c0_14 = arith.constant 0 : index
    %c0_15 = arith.constant 0 : index
    %14 = vector.load %arg11[%c0_14, %c0_15] : memref<8x32xf32, #tpu.memory_space<vmem>>, vector<8x32xf32>
    %c0_16 = arith.constant 0 : index
    %c0_17 = arith.constant 0 : index
    %15 = vector.load %arg12[%c0_16, %c0_17] : memref<8x32xf32, #tpu.memory_space<vmem>>, vector<8x32xf32>
    %c0_i32_18 = arith.constant 0 : i32
    %c8_i32 = arith.constant 8 : i32
    %16 = arith.muli %c0_i32_18, %c8_i32 : i32
    %17 = tpu.assume_multiple %16, 8 : i32
    %18 = arith.index_cast %17 : i32 to index
    %c0_19 = arith.constant 0 : index
    %19 = vector.load %arg9[%18, %c0_19] : memref<32x128xf32, #tpu.memory_space<vmem>>, vector<8x128xf32>
    %cst_20 = arith.constant dense<0.000000e+00> : vector<8x128xf32>
    %20 = tpu.matmul %13, %10, %cst_20 {dimension_numbers = #tpu.dot_dimension_numbers<[1], [0], [0], [1], [0, 0, 1, 1], [], []>} : vector<8x32xf32>, vector<32x128xf32>, vector<8x128xf32> -> vector<8x128xf32>
    %21 = arith.addf %19, %20 : vector<8x128xf32>
    %22 = arith.negf %21 : vector<8x128xf32>
    %23 = math.exp %22 : vector<8x128xf32>
    %cst_21 = arith.constant 1.000000e+00 : f32
    %24 = vector.broadcast %cst_21 : f32 to vector<8x128xf32>
    %25 = arith.addf %24, %23 : vector<8x128xf32>
    %26 = arith.divf %24, %25 : vector<8x128xf32>
    %27 = math.tanh %21 : vector<8x128xf32>
    %28 = vector.extract_strided_slice %26 {offsets = [0, 0], sizes = [8, 32], strides = [1, 1]} : vector<8x128xf32> to vector<8x32xf32>
    %29 = vector.extract_strided_slice %26 {offsets = [0, 32], sizes = [8, 32], strides = [1, 1]} : vector<8x128xf32> to vector<8x32xf32>
    %30 = vector.extract_strided_slice %27 {offsets = [0, 64], sizes = [8, 32], strides = [1, 1]} : vector<8x128xf32> to vector<8x32xf32>
    %31 = vector.extract_strided_slice %26 {offsets = [0, 96], sizes = [8, 32], strides = [1, 1]} : vector<8x128xf32> to vector<8x32xf32>
    %32 = arith.mulf %29, %14 : vector<8x32xf32>
    %33 = arith.mulf %28, %30 : vector<8x32xf32>
    %34 = arith.addf %32, %33 : vector<8x32xf32>
    %35 = math.tanh %34 : vector<8x32xf32>
    %36 = arith.mulf %31, %35 : vector<8x32xf32>
    %37 = arith.addi %12, %c0_i32_18 : i32
    %38 = vector.broadcast %37 : i32 to vector<8x1xi32>
    %39 = arith.cmpi sgt, %11, %38 : vector<8x1xi32>
    %40 = arith.maximumf %15, %36 : vector<8x32xf32>
    %41 = vector.shape_cast %39 : vector<8x1xi1> to vector<8x1xi1>
    %42 = vector.broadcast %41 : vector<8x1xi1> to vector<8x32xi1>
    %43 = arith.select %42, %40, %15 : vector<8x32xi1>, vector<8x32xf32>
    %c1_i32 = arith.constant 1 : i32
    %c8_i32_22 = arith.constant 8 : i32
    %44 = arith.muli %c1_i32, %c8_i32_22 : i32
    %45 = tpu.assume_multiple %44, 8 : i32
    %46 = arith.index_cast %45 : i32 to index
    %c0_23 = arith.constant 0 : index
    %47 = vector.load %arg9[%46, %c0_23] : memref<32x128xf32, #tpu.memory_space<vmem>>, vector<8x128xf32>
    %cst_24 = arith.constant dense<0.000000e+00> : vector<8x128xf32>
    %48 = tpu.matmul %36, %10, %cst_24 {dimension_numbers = #tpu.dot_dimension_numbers<[1], [0], [0], [1], [0, 0, 1, 1], [], []>} : vector<8x32xf32>, vector<32x128xf32>, vector<8x128xf32> -> vector<8x128xf32>
    %49 = arith.addf %47, %48 : vector<8x128xf32>
    %50 = arith.negf %49 : vector<8x128xf32>
    %51 = math.exp %50 : vector<8x128xf32>
    %cst_25 = arith.constant 1.000000e+00 : f32
    %52 = vector.broadcast %cst_25 : f32 to vector<8x128xf32>
    %53 = arith.addf %52, %51 : vector<8x128xf32>
    %54 = arith.divf %52, %53 : vector<8x128xf32>
    %55 = math.tanh %49 : vector<8x128xf32>
    %56 = vector.extract_strided_slice %54 {offsets = [0, 0], sizes = [8, 32], strides = [1, 1]} : vector<8x128xf32> to vector<8x32xf32>
    %57 = vector.extract_strided_slice %54 {offsets = [0, 32], sizes = [8, 32], strides = [1, 1]} : vector<8x128xf32> to vector<8x32xf32>
    %58 = vector.extract_strided_slice %55 {offsets = [0, 64], sizes = [8, 32], strides = [1, 1]} : vector<8x128xf32> to vector<8x32xf32>
    %59 = vector.extract_strided_slice %54 {offsets = [0, 96], sizes = [8, 32], strides = [1, 1]} : vector<8x128xf32> to vector<8x32xf32>
    %60 = arith.mulf %57, %34 : vector<8x32xf32>
    %61 = arith.mulf %56, %58 : vector<8x32xf32>
    %62 = arith.addf %60, %61 : vector<8x32xf32>
    %63 = math.tanh %62 : vector<8x32xf32>
    %64 = arith.mulf %59, %63 : vector<8x32xf32>
    %65 = arith.addi %12, %c1_i32 : i32
    %66 = vector.broadcast %65 : i32 to vector<8x1xi32>
    %67 = arith.cmpi sgt, %11, %66 : vector<8x1xi32>
    %68 = arith.maximumf %43, %64 : vector<8x32xf32>
    %69 = vector.shape_cast %67 : vector<8x1xi1> to vector<8x1xi1>
    %70 = vector.broadcast %69 : vector<8x1xi1> to vector<8x32xi1>
    %71 = arith.select %70, %68, %43 : vector<8x32xi1>, vector<8x32xf32>
    %c2_i32 = arith.constant 2 : i32
    %c8_i32_26 = arith.constant 8 : i32
    %72 = arith.muli %c2_i32, %c8_i32_26 : i32
    %73 = tpu.assume_multiple %72, 8 : i32
    %74 = arith.index_cast %73 : i32 to index
    %c0_27 = arith.constant 0 : index
    %75 = vector.load %arg9[%74, %c0_27] : memref<32x128xf32, #tpu.memory_space<vmem>>, vector<8x128xf32>
    %cst_28 = arith.constant dense<0.000000e+00> : vector<8x128xf32>
    %76 = tpu.matmul %64, %10, %cst_28 {dimension_numbers = #tpu.dot_dimension_numbers<[1], [0], [0], [1], [0, 0, 1, 1], [], []>} : vector<8x32xf32>, vector<32x128xf32>, vector<8x128xf32> -> vector<8x128xf32>
    %77 = arith.addf %75, %76 : vector<8x128xf32>
    %78 = arith.negf %77 : vector<8x128xf32>
    %79 = math.exp %78 : vector<8x128xf32>
    %cst_29 = arith.constant 1.000000e+00 : f32
    %80 = vector.broadcast %cst_29 : f32 to vector<8x128xf32>
    %81 = arith.addf %80, %79 : vector<8x128xf32>
    %82 = arith.divf %80, %81 : vector<8x128xf32>
    %83 = math.tanh %77 : vector<8x128xf32>
    %84 = vector.extract_strided_slice %82 {offsets = [0, 0], sizes = [8, 32], strides = [1, 1]} : vector<8x128xf32> to vector<8x32xf32>
    %85 = vector.extract_strided_slice %82 {offsets = [0, 32], sizes = [8, 32], strides = [1, 1]} : vector<8x128xf32> to vector<8x32xf32>
    %86 = vector.extract_strided_slice %83 {offsets = [0, 64], sizes = [8, 32], strides = [1, 1]} : vector<8x128xf32> to vector<8x32xf32>
    %87 = vector.extract_strided_slice %82 {offsets = [0, 96], sizes = [8, 32], strides = [1, 1]} : vector<8x128xf32> to vector<8x32xf32>
    %88 = arith.mulf %85, %62 : vector<8x32xf32>
    %89 = arith.mulf %84, %86 : vector<8x32xf32>
    %90 = arith.addf %88, %89 : vector<8x32xf32>
    %91 = math.tanh %90 : vector<8x32xf32>
    %92 = arith.mulf %87, %91 : vector<8x32xf32>
    %93 = arith.addi %12, %c2_i32 : i32
    %94 = vector.broadcast %93 : i32 to vector<8x1xi32>
    %95 = arith.cmpi sgt, %11, %94 : vector<8x1xi32>
    %96 = arith.maximumf %71, %92 : vector<8x32xf32>
    %97 = vector.shape_cast %95 : vector<8x1xi1> to vector<8x1xi1>
    %98 = vector.broadcast %97 : vector<8x1xi1> to vector<8x32xi1>
    %99 = arith.select %98, %96, %71 : vector<8x32xi1>, vector<8x32xf32>
    %c3_i32 = arith.constant 3 : i32
    %c8_i32_30 = arith.constant 8 : i32
    %100 = arith.muli %c3_i32, %c8_i32_30 : i32
    %101 = tpu.assume_multiple %100, 8 : i32
    %102 = arith.index_cast %101 : i32 to index
    %c0_31 = arith.constant 0 : index
    %103 = vector.load %arg9[%102, %c0_31] : memref<32x128xf32, #tpu.memory_space<vmem>>, vector<8x128xf32>
    %cst_32 = arith.constant dense<0.000000e+00> : vector<8x128xf32>
    %104 = tpu.matmul %92, %10, %cst_32 {dimension_numbers = #tpu.dot_dimension_numbers<[1], [0], [0], [1], [0, 0, 1, 1], [], []>} : vector<8x32xf32>, vector<32x128xf32>, vector<8x128xf32> -> vector<8x128xf32>
    %105 = arith.addf %103, %104 : vector<8x128xf32>
    %106 = arith.negf %105 : vector<8x128xf32>
    %107 = math.exp %106 : vector<8x128xf32>
    %cst_33 = arith.constant 1.000000e+00 : f32
    %108 = vector.broadcast %cst_33 : f32 to vector<8x128xf32>
    %109 = arith.addf %108, %107 : vector<8x128xf32>
    %110 = arith.divf %108, %109 : vector<8x128xf32>
    %111 = math.tanh %105 : vector<8x128xf32>
    %112 = vector.extract_strided_slice %110 {offsets = [0, 0], sizes = [8, 32], strides = [1, 1]} : vector<8x128xf32> to vector<8x32xf32>
    %113 = vector.extract_strided_slice %110 {offsets = [0, 32], sizes = [8, 32], strides = [1, 1]} : vector<8x128xf32> to vector<8x32xf32>
    %114 = vector.extract_strided_slice %111 {offsets = [0, 64], sizes = [8, 32], strides = [1, 1]} : vector<8x128xf32> to vector<8x32xf32>
    %115 = vector.extract_strided_slice %110 {offsets = [0, 96], sizes = [8, 32], strides = [1, 1]} : vector<8x128xf32> to vector<8x32xf32>
    %116 = arith.mulf %113, %90 : vector<8x32xf32>
    %117 = arith.mulf %112, %114 : vector<8x32xf32>
    %118 = arith.addf %116, %117 : vector<8x32xf32>
    %119 = math.tanh %118 : vector<8x32xf32>
    %120 = arith.mulf %115, %119 : vector<8x32xf32>
    %121 = arith.addi %12, %c3_i32 : i32
    %122 = vector.broadcast %121 : i32 to vector<8x1xi32>
    %123 = arith.cmpi sgt, %11, %122 : vector<8x1xi32>
    %124 = arith.maximumf %99, %120 : vector<8x32xf32>
    %125 = vector.shape_cast %123 : vector<8x1xi1> to vector<8x1xi1>
    %126 = vector.broadcast %125 : vector<8x1xi1> to vector<8x32xi1>
    %127 = arith.select %126, %124, %99 : vector<8x32xi1>, vector<8x32xf32>
    %c4_i32_34 = arith.constant 4 : i32
    %c0_35 = arith.constant 0 : index
    %c0_36 = arith.constant 0 : index
    %128 = vector.load %arg10[%c0_35, %c0_36] : memref<8x32xf32, #tpu.memory_space<vmem>>, vector<8x32xf32>
    tpu.vector_store %arg10[%c0_35, %c0_36], %120 {strides = array<i32>} : memref<8x32xf32, #tpu.memory_space<vmem>>, vector<8x32xf32>,
    %c0_37 = arith.constant 0 : index
    %c0_38 = arith.constant 0 : index
    %129 = vector.load %arg11[%c0_37, %c0_38] : memref<8x32xf32, #tpu.memory_space<vmem>>, vector<8x32xf32>
    tpu.vector_store %arg11[%c0_37, %c0_38], %118 {strides = array<i32>} : memref<8x32xf32, #tpu.memory_space<vmem>>, vector<8x32xf32>,
    %c0_39 = arith.constant 0 : index
    %c0_40 = arith.constant 0 : index
    %130 = vector.load %arg12[%c0_39, %c0_40] : memref<8x32xf32, #tpu.memory_space<vmem>>, vector<8x32xf32>
    tpu.vector_store %arg12[%c0_39, %c0_40], %127 {strides = array<i32>} : memref<8x32xf32, #tpu.memory_space<vmem>>, vector<8x32xf32>,
    %c1_i32_41 = arith.constant 1 : i32
    %131 = arith.cmpi eq, %arg0, %c1_i32_41 : i32
    %132 = arith.extui %131 : i1 to i32
    %c0_i32_42 = arith.constant 0 : i32
    %133 = arith.cmpi ne, %132, %c0_i32_42 : i32
    scf.if %133 {
      %c0_43 = arith.constant 0 : index
      %c0_44 = arith.constant 0 : index
      %134 = vector.load %arg6[%c0_43, %c0_44] : memref<32x128xf32, #tpu.memory_space<vmem>>, vector<32x128xf32>
      %cst_45 = arith.constant dense<0.000000e+00> : vector<8x128xf32>
      %135 = tpu.matmul %127, %134, %cst_45 {dimension_numbers = #tpu.dot_dimension_numbers<[1], [0], [0], [1], [0, 0, 1, 1], [], []>} : vector<8x32xf32>, vector<32x128xf32>, vector<8x128xf32> -> vector<8x128xf32>
      %c0_46 = arith.constant 0 : index
      %c0_47 = arith.constant 0 : index
      %136 = vector.load %arg7[%c0_46, %c0_47] : memref<1x128xf32, #tpu.memory_space<vmem>>, vector<1x128xf32>
      %137 = vector.broadcast %136 : vector<1x128xf32> to vector<8x128xf32>
      %138 = arith.addf %135, %137 : vector<8x128xf32>
      %c0_48 = arith.constant 0 : index
      %c0_49 = arith.constant 0 : index
      %139 = vector.load %arg8[%c0_48, %c0_49] : memref<8x128xf32, #tpu.memory_space<vmem>>, vector<8x128xf32>
      tpu.vector_store %arg8[%c0_48, %c0_49], %138 {strides = array<i32>} : memref<8x128xf32, #tpu.memory_space<vmem>>, vector<8x128xf32>,
    } else {
    }
    return
  }
  func.func @transform_0(%arg0: i32) -> (i32, i32) {
    %c0_i32 = arith.constant 0 : i32
    %c0_i32_0 = arith.constant 0 : i32
    return %arg0, %c0_i32 : i32, i32
  }
  func.func @transform_1(%arg0: i32) -> (i32, i32) {
    %c0_i32 = arith.constant 0 : i32
    %c0_i32_0 = arith.constant 0 : i32
    %c0_i32_1 = arith.constant 0 : i32
    return %c0_i32, %c0_i32_0 : i32, i32
  }
  func.func @transform_2(%arg0: i32) -> (i32, i32) {
    %c0_i32 = arith.constant 0 : i32
    %c0_i32_0 = arith.constant 0 : i32
    %c0_i32_1 = arith.constant 0 : i32
    return %c0_i32, %c0_i32_0 : i32, i32
  }
  func.func @transform_3(%arg0: i32) -> (i32, i32) {
    %c0_i32 = arith.constant 0 : i32
    %c0_i32_0 = arith.constant 0 : i32
    %c0_i32_1 = arith.constant 0 : i32
    return %c0_i32, %c0_i32_0 : i32, i32
  }
  func.func @transform_4(%arg0: i32) -> (i32, i32) {
    %c0_i32 = arith.constant 0 : i32
    %c0_i32_0 = arith.constant 0 : i32
    %c0_i32_1 = arith.constant 0 : i32
    return %c0_i32, %c0_i32_0 : i32, i32
  }
  func.func @transform_5(%arg0: i32) -> (i32, i32) {
    %c0_i32 = arith.constant 0 : i32
    %c0_i32_0 = arith.constant 0 : i32
    %c0_i32_1 = arith.constant 0 : i32
    return %c0_i32, %c0_i32_0 : i32, i32
  }
  func.func @transform_6(%arg0: i32) -> (i32, i32) {
    %c0_i32 = arith.constant 0 : i32
    %c0_i32_0 = arith.constant 0 : i32
    %c0_i32_1 = arith.constant 0 : i32
    return %c0_i32, %c0_i32_0 : i32, i32
  }
  func.func @transform_7(%arg0: i32) -> (i32, i32) {
    %c0_i32 = arith.constant 0 : i32
    %c0_i32_0 = arith.constant 0 : i32
    %c0_i32_1 = arith.constant 0 : i32
    return %c0_i32, %c0_i32_0 : i32, i32
  }
}

</mosaic_0001>

<llo_original>
// kernel: model_forward.1
$region0: #{model_forward.1}
  #allocation0 [shape = 'u32[]', space=smem, size = 0x4, offset = 0x4, fixed_abs, tag = 'smem constant byte address 0x4 - core index']
  #allocation1 [shape = 'u32[72,128]{1,0:T(1,128)}', space=vmem, size = 0x9000, scoped, tag = 'internal scratch']
  #allocation2 [shape = 'f32[32,128]{1,0:T(8,128)}', space=vmem, size = 0x4000, scoped, tag = 'scratch operand']
  #allocation3 [shape = 'f32[8,32]{1,0:T(8,128)}', space=vmem, size = 0x1000, scoped, tag = 'scratch operand']
  #allocation4 [shape = 'f32[8,32]{1,0:T(8,128)}', space=vmem, size = 0x1000, scoped, tag = 'scratch operand']
  #allocation5 [shape = 'f32[8,32]{1,0:T(8,128)}', space=vmem, size = 0x1000, scoped, tag = 'scratch operand']
  %s0 = inlined_call_operand.vmem [shape: bf16[64,32], index: 0, kind: input, shape index: {}]
  %s1 = inlined_call_operand.vmem [shape: bf16[32,128], index: 1, kind: input, shape index: {}]
  %s2 = inlined_call_operand.vmem [shape: f32[32,128], index: 2, kind: input, shape index: {}]
  %s3 = inlined_call_operand.vmem [shape: f32[1,128], index: 3, kind: input, shape index: {}]
  %s4 = inlined_call_operand.vmem [shape: s32[8,1], index: 4, kind: input, shape index: {}]
  %s5 = inlined_call_operand.vmem [shape: f32[32,128], index: 5, kind: input, shape index: {}]
  %s6 = inlined_call_operand.vmem [shape: f32[1,128], index: 6, kind: input, shape index: {}]
  %s7 = inlined_call_operand.vmem [shape: f32[8,128], index: 7, kind: output, shape index: {}]
  %s8 = sld [smem:[#allocation0]]
  $region69: #{model_forward.1} parent=0
    _
  %s10 = ssub.s32 1, %s8
  %s11 = scalar_select 0, %s10, %s8
  loop: start=0, step=1, limit=4
  $region2: #{model_forward.1} parent=0 // loop_pre_header
    _
  $region3: #{model_forward.1} parent=0 // loop_header
    %s13 = sphi 0, %s17
    %p14 = scmp.ge.s32.totalorder %s13, 4
    %s23 = sphi 0, %s25
    %s26 = sphi 0, %s23
    %s27 = sphi 0, %s26
    %s43 = sphi 0, %s27
    %s47 = sphi 0, %s47
    %s49 = sphi 0, %s47
    %s50 = sphi 0, %s49
    %s64 = sphi 0, %s50
    %s68 = sphi 0, %s68
    %s70 = sphi 0, %s68
    %s71 = sphi 0, %s70
    %s85 = sphi 0, %s71
    %s89 = sphi 0, %s89
    %s91 = sphi 0, %s89
    %s92 = sphi 0, %s91
    %s106 = sphi 0, %s92
    %s110 = sphi 0, %s110
    %s112 = sphi 0, %s110
    %s113 = sphi 0, %s112
    %s127 = sphi 0, %s113
    %s131 = sphi 0, %s131
    %s133 = sphi 0, %s131
    %s134 = sphi 0, %s133
    %s148 = sphi 0, %s134
    %s152 = sphi 0, %s152
    %s154 = sphi 0, %s152
    %s155 = sphi 0, %s154
    %s169 = sphi 0, %s155
    %s173 = sphi 0, %s173
    %s175 = sphi 0, %s173
    %s176 = sphi 0, %s175
    %s190 = sphi 0, %s176
  $region4: #{model_forward.1} parent=0 // loop_header_branch
    %16 = sbr.rel (%p14) target = $region8
  $region5: #{model_forward.1} parent=0 // loop_body
    %s18 = ssub.s32 %s13, 1
    %s19 = ssub.s32 %s13, 2
    %s20 = sadd.s32 %s13, 1
    %s21 = ssub.s32 %s13, %s20
    %p22 = scmp.eq.s32.totalorder %s21, 0
    %s24 = sadd.s32 %s23, 1
    %s25 = scalar_select %p22, %s23, %s24
    %p28 = pneg %p22
    %p29 = scmp.eq.s32.totalorder %s13, 1
    %p30 = por %p28, %p29
    %p31 = scmp.ne.s32.totalorder %s23, %s26
    %p32 = scmp.eq.s32.totalorder %s13, 0
    %p33 = por %p31, %p32
    %p34 = scmp.ne.s32.totalorder %s23, %s26
    %p35 = scmp.eq.s32.totalorder %s18, 1
    %p36 = por %p34, %p35
    %p37 = scmp.ne.s32.totalorder %s26, %s27
    %p38 = scmp.eq.s32.totalorder %s18, 0
    %p39 = por %p37, %p38
    %p40 = scmp.ne.s32.totalorder %s26, %s27
    %p41 = scmp.eq.s32.totalorder %s19, 1
    %p42 = por %p40, %p41
    %p44 = scmp.ne.s32.totalorder %s27, %s43
    %p45 = scmp.eq.s32.totalorder %s19, 0
    %p46 = por %p44, %p45
    %s48 = sadd.s32 %s47, 1
    %p51 = scmp.eq.s32.totalorder %s13, 1
    %p52 = scmp.ne.s32.totalorder %s47, %s49
    %p53 = scmp.eq.s32.totalorder %s13, 0
    %p54 = por %p52, %p53
    %p55 = scmp.ne.s32.totalorder %s47, %s49
    %p56 = scmp.eq.s32.totalorder %s18, 1
    %p57 = por %p55, %p56
    %p58 = scmp.ne.s32.totalorder %s49, %s50
    %p59 = scmp.eq.s32.totalorder %s18, 0
    %p60 = por %p58, %p59
    %p61 = scmp.ne.s32.totalorder %s49, %s50
    %p62 = scmp.eq.s32.totalorder %s19, 1
    %p63 = por %p61, %p62
    %p65 = scmp.ne.s32.totalorder %s50, %s64
    %p66 = scmp.eq.s32.totalorder %s19, 0
    %p67 = por %p65, %p66
    %s69 = sadd.s32 %s68, 1
    %p72 = scmp.eq.s32.totalorder %s13, 1
    %p73 = scmp.ne.s32.totalorder %s68, %s70
    %p74 = scmp.eq.s32.totalorder %s13, 0
    %p75 = por %p73, %p74
    %p76 = scmp.ne.s32.totalorder %s68, %s70
    %p77 = scmp.eq.s32.totalorder %s18, 1
    %p78 = por %p76, %p77
    %p79 = scmp.ne.s32.totalorder %s70, %s71
    %p80 = scmp.eq.s32.totalorder %s18, 0
    %p81 = por %p79, %p80
    %p82 = scmp.ne.s32.totalorder %s70, %s71
    %p83 = scmp.eq.s32.totalorder %s19, 1
    %p84 = por %p82, %p83
    %p86 = scmp.ne.s32.totalorder %s71, %s85
    %p87 = scmp.eq.s32.totalorder %s19, 0
    %p88 = por %p86, %p87
    %s90 = sadd.s32 %s89, 1
    %p93 = scmp.eq.s32.totalorder %s13, 1
    %p94 = scmp.ne.s32.totalorder %s89, %s91
    %p95 = scmp.eq.s32.totalorder %s13, 0
    %p96 = por %p94, %p95
    %p97 = scmp.ne.s32.totalorder %s89, %s91
    %p98 = scmp.eq.s32.totalorder %s18, 1
    %p99 = por %p97, %p98
    %p100 = scmp.ne.s32.totalorder %s91, %s92
    %p101 = scmp.eq.s32.totalorder %s18, 0
    %p102 = por %p100, %p101
    %p103 = scmp.ne.s32.totalorder %s91, %s92
    %p104 = scmp.eq.s32.totalorder %s19, 1
    %p105 = por %p103, %p104
    %p107 = scmp.ne.s32.totalorder %s92, %s106
    %p108 = scmp.eq.s32.totalorder %s19, 0
    %p109 = por %p107, %p108
    %s111 = sadd.s32 %s110, 1
    %p114 = scmp.eq.s32.totalorder %s13, 1
    %p115 = scmp.ne.s32.totalorder %s110, %s112
    %p116 = scmp.eq.s32.totalorder %s13, 0
    %p117 = por %p115, %p116
    %p118 = scmp.ne.s32.totalorder %s110, %s112
    %p119 = scmp.eq.s32.totalorder %s18, 1
    %p120 = por %p118, %p119
    %p121 = scmp.ne.s32.totalorder %s112, %s113
    %p122 = scmp.eq.s32.totalorder %s18, 0
    %p123 = por %p121, %p122
    %p124 = scmp.ne.s32.totalorder %s112, %s113
    %p125 = scmp.eq.s32.totalorder %s19, 1
    %p126 = por %p124, %p125
    %p128 = scmp.ne.s32.totalorder %s113, %s127
    %p129 = scmp.eq.s32.totalorder %s19, 0
    %p130 = por %p128, %p129
    %s132 = sadd.s32 %s131, 1
    %p135 = scmp.eq.s32.totalorder %s13, 1
    %p136 = scmp.ne.s32.totalorder %s131, %s133
    %p137 = scmp.eq.s32.totalorder %s13, 0
    %p138 = por %p136, %p137
    %p139 = scmp.ne.s32.totalorder %s131, %s133
    %p140 = scmp.eq.s32.totalorder %s18, 1
    %p141 = por %p139, %p140
    %p142 = scmp.ne.s32.totalorder %s133, %s134
    %p143 = scmp.eq.s32.totalorder %s18, 0
    %p144 = por %p142, %p143
    %p145 = scmp.ne.s32.totalorder %s133, %s134
    %p146 = scmp.eq.s32.totalorder %s19, 1
    %p147 = por %p145, %p146
    %p149 = scmp.ne.s32.totalorder %s134, %s148
    %p150 = scmp.eq.s32.totalorder %s19, 0
    %p151 = por %p149, %p150
    %s153 = sadd.s32 %s152, 1
    %p156 = scmp.eq.s32.totalorder %s13, 1
    %p157 = scmp.ne.s32.totalorder %s152, %s154
    %p158 = scmp.eq.s32.totalorder %s13, 0
    %p159 = por %p157, %p158
    %p160 = scmp.ne.s32.totalorder %s152, %s154
    %p161 = scmp.eq.s32.totalorder %s18, 1
    %p162 = por %p160, %p161
    %p163 = scmp.ne.s32.totalorder %s154, %s155
    %p164 = scmp.eq.s32.totalorder %s18, 0
    %p165 = por %p163, %p164
    %p166 = scmp.ne.s32.totalorder %s154, %s155
    %p167 = scmp.eq.s32.totalorder %s19, 1
    %p168 = por %p166, %p167
    %p170 = scmp.ne.s32.totalorder %s155, %s169
    %p171 = scmp.eq.s32.totalorder %s19, 0
    %p172 = por %p170, %p171
    %s174 = sadd.s32 %s173, 1
    %p177 = scmp.eq.s32.totalorder %s13, 1
    %p178 = scmp.ne.s32.totalorder %s173, %s175
    %p179 = scmp.eq.s32.totalorder %s13, 0
    %p180 = por %p178, %p179
    %p181 = scmp.ne.s32.totalorder %s173, %s175
    %p182 = scmp.eq.s32.totalorder %s18, 1
    %p183 = por %p181, %p182
    %p184 = scmp.ne.s32.totalorder %s175, %s176
    %p185 = scmp.eq.s32.totalorder %s18, 0
    %p186 = por %p184, %p185
    %p187 = scmp.ne.s32.totalorder %s175, %s176
    %p188 = scmp.eq.s32.totalorder %s19, 1
    %p189 = por %p187, %p188
    %p191 = scmp.ne.s32.totalorder %s176, %s190
    %p192 = scmp.eq.s32.totalorder %s19, 0
    %p193 = por %p191, %p192
    %p194 = scmp.le.s32.totalorder 1, %s13
    %p195 = scmp.lt.s32.totalorder %s13, 3
    %p196 = pnand %p194, %p195
    %p197 = pneg %p196
    // Predicated region
    $region9: #{model_forward.1} parent=5 // pred_check
      _
    $region10: #{model_forward.1} parent=5 // pred_check_branch
      %199 = sbr.rel (%p196) target = $region12
    $region11: #{model_forward.1} parent=5 // pred_region
      %s200 = ssub.s32 %s13, 1
      // Predicated region
      $region13: #{model_forward.1} parent=11 // pred_check
        %p201 = pneg %p60
      $region14: #{model_forward.1} parent=11 // pred_check_branch
        %203 = sbr.rel (%p201) target = $region16
      $region15: #{model_forward.1} parent=11 // pred_region
        _
      $region16: #{model_forward.1} parent=11 // pred_fallthru
        _
      // Predicated region
      $region17: #{model_forward.1} parent=11 // pred_check
        %p204 = pneg %p81
      $region18: #{model_forward.1} parent=11 // pred_check_branch
        %206 = sbr.rel (%p204) target = $region20
      $region19: #{model_forward.1} parent=11 // pred_region
        _
      $region20: #{model_forward.1} parent=11 // pred_fallthru
        _
      // Predicated region
      $region21: #{model_forward.1} parent=11 // pred_check
        %p207 = pneg %p102
      $region22: #{model_forward.1} parent=11 // pred_check_branch
        %209 = sbr.rel (%p207) target = $region24
      $region23: #{model_forward.1} parent=11 // pred_region
        _
      $region24: #{model_forward.1} parent=11 // pred_fallthru
        _
      // Predicated region
      $region25: #{model_forward.1} parent=11 // pred_check
        %p210 = pneg %p123
      $region26: #{model_forward.1} parent=11 // pred_check_branch
        %212 = sbr.rel (%p210) target = $region28
      $region27: #{model_forward.1} parent=11 // pred_region
        _
      $region28: #{model_forward.1} parent=11 // pred_fallthru
        _
      // Predicated region
      $region29: #{model_forward.1} parent=11 // pred_check
        %p213 = pneg %p144
      $region30: #{model_forward.1} parent=11 // pred_check_branch
        %215 = sbr.rel (%p213) target = $region32
      $region31: #{model_forward.1} parent=11 // pred_region
        _
      $region32: #{model_forward.1} parent=11 // pred_fallthru
        _
      // Predicated region
      $region33: #{model_forward.1} parent=11 // pred_check
        %p216 = pneg %p165
      $region34: #{model_forward.1} parent=11 // pred_check_branch
        %218 = sbr.rel (%p216) target = $region36
      $region35: #{model_forward.1} parent=11 // pred_region
        _
      $region36: #{model_forward.1} parent=11 // pred_fallthru
        _
    $region12: #{model_forward.1} parent=5 // pred_fallthru
      _
    %p219 = scmp.lt.s32.totalorder %s13, 2
    // Predicated region
    $region37: #{model_forward.1} parent=5 // pred_check
      %p220 = pneg %p219
    $region38: #{model_forward.1} parent=5 // pred_check_branch
      %222 = sbr.rel (%p220) target = $region40
    $region39: #{model_forward.1} parent=5 // pred_region
      // Predicated region
      $region41: #{model_forward.1} parent=39 // pred_check
        %p223 = pneg %p33
      $region42: #{model_forward.1} parent=39 // pred_check_branch
        %225 = sbr.rel (%p223) target = $region44
      $region43: #{model_forward.1} parent=39 // pred_region
        %s226 = smul.u32 4, %s13
        %p227 = scmp.lt.s32.totalorder %s226, 7
        %s228 = scalar_select %p227, %s226, 7
        %s229 = smul.addr %s228, 4
        %s230 = scalar_lea.vmem %s0, %s229
        %s231 = smul.u32 4, %s13
      $region44: #{model_forward.1} parent=39 // pred_fallthru
        _
    $region40: #{model_forward.1} parent=5 // pred_fallthru
      _
    %p232 = scmp.le.s32.totalorder 1, %s13
    %p233 = scmp.lt.s32.totalorder %s13, 3
    %p234 = pnand %p232, %p233
    %p235 = pneg %p234
    // Predicated region
    $region45: #{model_forward.1} parent=5 // pred_check
      _
    $region46: #{model_forward.1} parent=5 // pred_check_branch
      %237 = sbr.rel (%p234) target = $region48
    $region47: #{model_forward.1} parent=5 // pred_region
      %s238 = ssub.s32 %s13, 1
      %s239 = smul.u32 4, %s18
      %p240 = scmp.lt.s32.totalorder %s239, 7
      %s241 = scalar_select %p240, %s239, 7
      %s242 = smul.addr %s241, 4
      %s243 = scalar_lea.vmem %s0, %s242
      %p244 = pneg %p39
      %p245 = pneg %p36
      %p246 = pneg %p60
      %p247 = pneg %p57
      %p248 = pneg %p81
      %p249 = pneg %p78
      %p250 = pneg %p102
      %p251 = pneg %p99
      %p252 = pneg %p123
      %p253 = pneg %p120
      %p254 = pneg %p144
      %p255 = pneg %p141
      %p256 = pneg %p165
      %p257 = pneg %p162
      %p258 = pneg %p186
      %p259 = pneg %p183
      %s260 = smul.u32 4, %s18
      %p261 = scmp.lt.s32.totalorder %s260, 7
      %s262 = scalar_select %p261, %s260, 7
      %s263 = smul.addr %s262, 4
      %s264 = scalar_lea.vmem %s0, %s263
      %s265 = smul.u32 4, %s18
      %p267 = scmp.eq.s32.totalorder %s18, 0
      // Predicated region
      $region49: #{model_forward.1} parent=47 // pred_check
        %p268 = pneg %p267
      $region50: #{model_forward.1} parent=47 // pred_check_branch
        %270 = sbr.rel (%p268) target = $region52
      $region51: #{model_forward.1} parent=47 // pred_region
        %vm271 = vcmask 261120
        %272 = vst.msk [vmem:[#allocation3] sm:$0xff] %vm271, 0.0
        %273 = vst.msk [vmem:[#allocation4] sm:$0xff] %vm271, 0.0
        %274 = vst.msk [vmem:[#allocation5] sm:$0xff] %vm271, -1e+30
      $region52: #{model_forward.1} parent=47 // pred_fallthru
        _
      %v275 = vld [vmem:[%s264] sm:$0xf]
      %v276 = vld [vmem:[%s264 + $0x4] sm:$0xf]
      %v277 = vld [vmem:[%s264 + $0x8] sm:$0xf]
      %v278 = vld [vmem:[%s264 + $0xc] sm:$0xf]
      %v279 = vld [vmem:[%s1] sm:$0xf]
      %v280 = vld [vmem:[%s1 + $0x4] sm:$0xf]
      %v281 = vld [vmem:[%s1 + $0x8] sm:$0xf]
      %v282 = vld [vmem:[%s1 + $0xc] sm:$0xf]
      %v283 = vld [vmem:[%s3] sm:$0x1]
      %v285 = vperm.slane %v283, 0
      %v291 = vunpack.c.l.b16 %v275
      %v292 = vunpack.c.l.b16 %v276
      %v293 = vunpack.c.l.b16 %v277
      %v294 = vunpack.c.l.b16 %v278
      %v295 = vpack.c.b16 %v292, %v291
      %v296 = vpack.c.b16 %v294, %v293
      %v301 = vunpack.c.l.b16 %v279
      %v302 = vunpack.c.l.b16 %v280
      %v303 = vunpack.c.l.b16 %v281
      %v304 = vunpack.c.l.b16 %v282
      %v305 = vpack.c.b16 %v302, %v301
      %v306 = vpack.c.b16 %v304, %v303
      %vm309 = vcmask 261120
      %v311 = vsel %vm309, %v295, 0
      %v314 = vsel %vm309, %v296, 0
      %316 = vmatpush.bf16.msra.mxu0 0
      %317 = vmatpush.bf16.msra.mxu0 0
      %318 = vmatpush.bf16.msra.mxu0 0
      %319 = vmatpush.bf16.msra.mxu0 0
      %320 = vmatpush.bf16.msra.mxu0 0
      %321 = vmatpush.bf16.msra.mxu0 0
      %322 = vmatpush.bf16.msra.mxu0 %v306
      %323 = vmatpush.bf16.msra.mxu0 %v305
      %324 = vmatmul.bf16.gmra.mxu0 %v311
      %v325 = vpop.f32.mrf.mxu0
      %v326 = vadd.f32 %v285, %v325
      %v327 = vpop.f32.mrf.mxu0
      %v328 = vadd.f32 %v285, %v327
      %329 = vmatmul.bf16.gmra.mxu0 %v314
      %v330 = vpop.f32.mrf.mxu0
      %v331 = vadd.f32 %v285, %v330
      %v332 = vpop.f32.mrf.mxu0
      %v333 = vadd.f32 %v285, %v332
      %334 = vdwg.mxu0
      %335 = vst [vmem:[#allocation2] sm:$0xff] %v326
      %336 = vst [vmem:[#allocation2 + $0x8] sm:$0xff] %v328
      %337 = vst [vmem:[#allocation2 + $0x10] sm:$0xff] %v331
      %338 = vst [vmem:[#allocation2 + $0x18] sm:$0xff] %v333
      %v339 = vld [vmem:[%s2] sm:$0xff]
      %v340 = vld [vmem:[%s2 + $0x8] sm:$0xff]
      %v341 = vld [vmem:[%s2 + $0x10] sm:$0xff]
      %v342 = vld [vmem:[%s2 + $0x18] sm:$0xff]
      %v343 = vld [vmem:[%s4] sm:$0xff]
      %s344 = smul.u32 %s18, 4
      %v345 = vld [vmem:[#allocation3] sm:$0xff]
      %v346 = vld [vmem:[#allocation4] sm:$0xff]
      %v347 = vld [vmem:[#allocation5] sm:$0xff]
      %v348 = vld [vmem:[#allocation2] sm:$0xff]
      %v350 = vsel %vm309, %v345, 0
      %352 = vmatpush.msra.mxu0 0.0
      %353 = vmatpush.msra.mxu0 0.0
      %354 = vmatpush.msra.mxu0 0.0
      %355 = vmatpush.msra.mxu0 0.0
      %356 = vmatpush.msra.mxu0 0.0
      %357 = vmatpush.msra.mxu0 0.0
      %358 = vmatpush.msra.mxu0 0.0
      %359 = vmatpush.msra.mxu0 0.0
      %360 = vmatpush.msra.mxu0 0.0
      %361 = vmatpush.msra.mxu0 0.0
      %362 = vmatpush.msra.mxu0 0.0
      %363 = vmatpush.msra.mxu0 0.0
      %364 = vmatpush.msra.mxu0 %v342
      %365 = vmatpush.msra.mxu0 %v341
      %366 = vmatpush.msra.mxu0 %v340
      %367 = vmatpush.msra.mxu0 %v339
      %368 = vmatmul.f32.gmra.mxu0 %v350
      %v369 = vpop.f32.mrf.mxu0
      %v370 = vadd.f32 0.0, %v369
      %371 = vdwg.mxu0
      %v372 = vadd.f32 %v348, %v370
      %v373 = vxor.u32 %v372, 2147483648
      %v374 = vmul.f32 %v373, 1.442695
      %v375 = vpow.pop %v374
      %v376 = vadd.f32 %v375, 1.0
      %v377 = vrcp.pop %v376
      %v378 = vmul.f32 %v376, %v377
      %v379 = vsub.f32 1.0, %v378
      %v380 = vmul.f32 %v377, %v379
      %v381 = vadd.f32 %v377, %v380
      %vm382 = vweird.f32 %v376
      %vm383 = vweird.f32 %v377
      %vm384 = vmor %vm382, %vm383
      %v385 = vsel %vm384, %v377, %v381
      %v386 = vand.u32 2147483647, %v376
      %vm387 = vcmp.eq.f32.partialorder %v386, 8.507059e+37
      %v388 = vand.u32 %v376, 2147483648
      %v389 = vor.u32 1.1754944e-38, %v388
      %v390 = vsel %vm387, %v389, %v385
      %v391 = vmul.f32 1.0, %v390
      %v392 = vtanh.pop %v372
      %394 = vrot.lane.b32.xlu0 %v346, 32
      %v395 = vpop.permute.xlu0 %394
      %v397 = vmul.f32 %v391, %v395
      %399 = vrot.lane.b32.xlu0 %v392, 64
      %v400 = vpop.permute.xlu0 %399
      %v402 = vmul.f32 %v391, %v400
      %404 = vrot.lane.b32.xlu0 %v402, 32
      %v405 = vpop.permute.xlu0 %404
      %v407 = vadd.f32 %v397, %v405
      %v408 = vtanh.pop %v407
      %410 = vrot.lane.b32.xlu0 %v408, 64
      %v411 = vpop.permute.xlu0 %410
      %v413 = vmul.f32 %v391, %v411
      %v414 = vstv %s344
      %vm415 = vcmp.gt.s32.totalorder %v343, %v414
      %417 = vrot.lane.b32.xlu0 %v413, 32
      %v418 = vpop.permute.xlu0 %417
      %v420 = vmax.f32 %v347, %v418
      %v421 = vsel %vm415, 1, 0
      %422 = vset.pattern.permute.xlu0 0
      %423 = vperm.xlu0 %422, %v421
      %v424 = vpop.permute.xlu0 %423
      %vm425 = vcmp.eq.s32.totalorder %v424, 1
      %v426 = vsel %vm425, %v420, %v347
      %s427 = scalar_lea.vmem [#allocation2], 8
      %v428 = vld [vmem:[%s427] sm:$0xff]
      %v429 = vsel %vm309, %v418, 0
      %431 = vmatpush.msra.mxu0 0.0
      %432 = vmatpush.msra.mxu0 0.0
      %433 = vmatpush.msra.mxu0 0.0
      %434 = vmatpush.msra.mxu0 0.0
      %435 = vmatpush.msra.mxu0 0.0
      %436 = vmatpush.msra.mxu0 0.0
      %437 = vmatpush.msra.mxu0 0.0
      %438 = vmatpush.msra.mxu0 0.0
      %439 = vmatpush.msra.mxu0 0.0
      %440 = vmatpush.msra.mxu0 0.0
      %441 = vmatpush.msra.mxu0 0.0
      %442 = vmatpush.msra.mxu0 0.0
      %443 = vmatpush.msra.mxu0 %v342
      %444 = vmatpush.msra.mxu0 %v341
      %445 = vmatpush.msra.mxu0 %v340
      %446 = vmatpush.msra.mxu0 %v339
      %447 = vmatmul.f32.gmra.mxu0 %v429
      %v448 = vpop.f32.mrf.mxu0
      %v449 = vadd.f32 0.0, %v448
      %450 = vdwg.mxu0
      %v451 = vadd.f32 %v428, %v449
      %v452 = vxor.u32 %v451, 2147483648
      %v453 = vmul.f32 %v452, 1.442695
      %v454 = vpow.pop %v453
      %v455 = vadd.f32 %v454, 1.0
      %v456 = vrcp.pop %v455
      %v457 = vmul.f32 %v455, %v456
      %v458 = vsub.f32 1.0, %v457
      %v459 = vmul.f32 %v456, %v458
      %v460 = vadd.f32 %v456, %v459
      %vm461 = vweird.f32 %v455
      %vm462 = vweird.f32 %v456
      %vm463 = vmor %vm461, %vm462
      %v464 = vsel %vm463, %v456, %v460
      %v465 = vand.u32 2147483647, %v455
      %vm466 = vcmp.eq.f32.partialorder %v465, 8.507059e+37
      %v467 = vand.u32 %v455, 2147483648
      %v468 = vor.u32 1.1754944e-38, %v467
      %v469 = vsel %vm466, %v468, %v464
      %v470 = vmul.f32 1.0, %v469
      %v471 = vtanh.pop %v451
      %v472 = vmul.f32 %v470, %v407
      %474 = vrot.lane.b32.xlu0 %v471, 64
      %v475 = vpop.permute.xlu0 %474
      %v477 = vmul.f32 %v470, %v475
      %479 = vrot.lane.b32.xlu0 %v477, 32
      %v480 = vpop.permute.xlu0 %479
      %v482 = vadd.f32 %v472, %v480
      %v483 = vtanh.pop %v482
      %485 = vrot.lane.b32.xlu0 %v483, 64
      %v486 = vpop.permute.xlu0 %485
      %v488 = vmul.f32 %v470, %v486
      %s489 = sadd.s32 %s344, 1
      %v490 = vstv %s489
      %vm491 = vcmp.gt.s32.totalorder %v343, %v490
      %493 = vrot.lane.b32.xlu0 %v488, 32
      %v494 = vpop.permute.xlu0 %493
      %v496 = vmax.f32 %v426, %v494
      %v497 = vsel %vm491, 1, 0
      %498 = vset.pattern.permute.xlu0 0
      %499 = vperm.xlu0 %498, %v497
      %v500 = vpop.permute.xlu0 %499
      %vm501 = vcmp.eq.s32.totalorder %v500, 1
      %v502 = vsel %vm501, %v496, %v426
      %s503 = scalar_lea.vmem [#allocation2], 16
      %v504 = vld [vmem:[%s503] sm:$0xff]
      %v505 = vsel %vm309, %v494, 0
      %507 = vmatpush.msra.mxu0 0.0
      %508 = vmatpush.msra.mxu0 0.0
      %509 = vmatpush.msra.mxu0 0.0
      %510 = vmatpush.msra.mxu0 0.0
      %511 = vmatpush.msra.mxu0 0.0
      %512 = vmatpush.msra.mxu0 0.0
      %513 = vmatpush.msra.mxu0 0.0
      %514 = vmatpush.msra.mxu0 0.0
      %515 = vmatpush.msra.mxu0 0.0
      %516 = vmatpush.msra.mxu0 0.0
      %517 = vmatpush.msra.mxu0 0.0
      %518 = vmatpush.msra.mxu0 0.0
      %519 = vmatpush.msra.mxu0 %v342
      %520 = vmatpush.msra.mxu0 %v341
      %521 = vmatpush.msra.mxu0 %v340
      %522 = vmatpush.msra.mxu0 %v339
      %523 = vmatmul.f32.gmra.mxu0 %v505
      %v524 = vpop.f32.mrf.mxu0
      %v525 = vadd.f32 0.0, %v524
      %526 = vdwg.mxu0
      %v527 = vadd.f32 %v504, %v525
      %v528 = vxor.u32 %v527, 2147483648
      %v529 = vmul.f32 %v528, 1.442695
      %v530 = vpow.pop %v529
      %v531 = vadd.f32 %v530, 1.0
      %v532 = vrcp.pop %v531
      %v533 = vmul.f32 %v531, %v532
      %v534 = vsub.f32 1.0, %v533
      %v535 = vmul.f32 %v532, %v534
      %v536 = vadd.f32 %v532, %v535
      %vm537 = vweird.f32 %v531
      %vm538 = vweird.f32 %v532
      %vm539 = vmor %vm537, %vm538
      %v540 = vsel %vm539, %v532, %v536
      %v541 = vand.u32 2147483647, %v531
      %vm542 = vcmp.eq.f32.partialorder %v541, 8.507059e+37
      %v543 = vand.u32 %v531, 2147483648
      %v544 = vor.u32 1.1754944e-38, %v543
      %v545 = vsel %vm542, %v544, %v540
      %v546 = vmul.f32 1.0, %v545
      %v547 = vtanh.pop %v527
      %v548 = vmul.f32 %v546, %v482
      %550 = vrot.lane.b32.xlu0 %v547, 64
      %v551 = vpop.permute.xlu0 %550
      %v553 = vmul.f32 %v546, %v551
      %555 = vrot.lane.b32.xlu0 %v553, 32
      %v556 = vpop.permute.xlu0 %555
      %v558 = vadd.f32 %v548, %v556
      %v559 = vtanh.pop %v558
      %561 = vrot.lane.b32.xlu0 %v559, 64
      %v562 = vpop.permute.xlu0 %561
      %v564 = vmul.f32 %v546, %v562
      %s565 = sadd.s32 %s344, 2
      %v566 = vstv %s565
      %vm567 = vcmp.gt.s32.totalorder %v343, %v566
      %569 = vrot.lane.b32.xlu0 %v564, 32
      %v570 = vpop.permute.xlu0 %569
      %v572 = vmax.f32 %v502, %v570
      %v573 = vsel %vm567, 1, 0
      %574 = vset.pattern.permute.xlu0 0
      %575 = vperm.xlu0 %574, %v573
      %v576 = vpop.permute.xlu0 %575
      %vm577 = vcmp.eq.s32.totalorder %v576, 1
      %v578 = vsel %vm577, %v572, %v502
      %s579 = scalar_lea.vmem [#allocation2], 24
      %v580 = vld [vmem:[%s579] sm:$0xff]
      %v581 = vsel %vm309, %v570, 0
      %583 = vmatpush.msra.mxu0 0.0
      %584 = vmatpush.msra.mxu0 0.0
      %585 = vmatpush.msra.mxu0 0.0
      %586 = vmatpush.msra.mxu0 0.0
      %587 = vmatpush.msra.mxu0 0.0
      %588 = vmatpush.msra.mxu0 0.0
      %589 = vmatpush.msra.mxu0 0.0
      %590 = vmatpush.msra.mxu0 0.0
      %591 = vmatpush.msra.mxu0 0.0
      %592 = vmatpush.msra.mxu0 0.0
      %593 = vmatpush.msra.mxu0 0.0
      %594 = vmatpush.msra.mxu0 0.0
      %595 = vmatpush.msra.mxu0 %v342
      %596 = vmatpush.msra.mxu0 %v341
      %597 = vmatpush.msra.mxu0 %v340
      %598 = vmatpush.msra.mxu0 %v339
      %599 = vmatmul.f32.gmra.mxu0 %v581
      %v600 = vpop.f32.mrf.mxu0
      %v601 = vadd.f32 0.0, %v600
      %602 = vdwg.mxu0
      %v603 = vadd.f32 %v580, %v601
      %v604 = vxor.u32 %v603, 2147483648
      %v605 = vmul.f32 %v604, 1.442695
      %v606 = vpow.pop %v605
      %v607 = vadd.f32 %v606, 1.0
      %v608 = vrcp.pop %v607
      %v609 = vmul.f32 %v607, %v608
      %v610 = vsub.f32 1.0, %v609
      %v611 = vmul.f32 %v608, %v610
      %v612 = vadd.f32 %v608, %v611
      %vm613 = vweird.f32 %v607
      %vm614 = vweird.f32 %v608
      %vm615 = vmor %vm613, %vm614
      %v616 = vsel %vm615, %v608, %v612
      %v617 = vand.u32 2147483647, %v607
      %vm618 = vcmp.eq.f32.partialorder %v617, 8.507059e+37
      %v619 = vand.u32 %v607, 2147483648
      %v620 = vor.u32 1.1754944e-38, %v619
      %v621 = vsel %vm618, %v620, %v616
      %v622 = vmul.f32 1.0, %v621
      %v623 = vtanh.pop %v603
      %v624 = vmul.f32 %v622, %v558
      %626 = vrot.lane.b32.xlu0 %v623, 64
      %v627 = vpop.permute.xlu0 %626
      %v629 = vmul.f32 %v622, %v627
      %631 = vrot.lane.b32.xlu0 %v629, 32
      %v632 = vpop.permute.xlu0 %631
      %v634 = vadd.f32 %v624, %v632
      %v635 = vtanh.pop %v634
      %637 = vrot.lane.b32.xlu0 %v635, 64
      %v638 = vpop.permute.xlu0 %637
      %v640 = vmul.f32 %v622, %v638
      %s641 = sadd.s32 %s344, 3
      %v642 = vstv %s641
      %vm643 = vcmp.gt.s32.totalorder %v343, %v642
      %645 = vrot.lane.b32.xlu0 %v640, 32
      %v646 = vpop.permute.xlu0 %645
      %v648 = vmax.f32 %v578, %v646
      %v649 = vsel %vm643, 1, 0
      %650 = vset.pattern.permute.xlu0 0
      %651 = vperm.xlu0 %650, %v649
      %v652 = vpop.permute.xlu0 %651
      %vm653 = vcmp.eq.s32.totalorder %v652, 1
      %v654 = vsel %vm653, %v648, %v578
      %655 = vst.msk [vmem:[#allocation3] sm:$0xff] %vm309, %v646
      %657 = vrot.lane.b32.xlu0 %v634, 96
      %v658 = vpop.permute.xlu0 %657
      %660 = vst.msk [vmem:[#allocation4] sm:$0xff] %vm309, %v658
      %661 = vst.msk [vmem:[#allocation5] sm:$0xff] %vm309, %v654
      %p662 = scmp.eq.s32.totalorder %s18, 1
      // Predicated region
      $region53: #{model_forward.1} parent=47 // pred_check
        %p663 = pneg %p662
      $region54: #{model_forward.1} parent=47 // pred_check_branch
        %665 = sbr.rel (%p663) target = $region56
      $region55: #{model_forward.1} parent=47 // pred_region
        %v666 = vld [vmem:[%s5] sm:$0xff]
        %v667 = vld [vmem:[%s5 + $0x8] sm:$0xff]
        %v668 = vld [vmem:[%s5 + $0x10] sm:$0xff]
        %v669 = vld [vmem:[%s5 + $0x18] sm:$0xff]
        %v670 = vld [vmem:[%s6] sm:$0x1]
        %v672 = vperm.slane %v670, 0
        %v675 = vsel %vm309, %v654, 0
        %677 = vmatpush.msra.mxu0 0.0
        %678 = vmatpush.msra.mxu0 0.0
        %679 = vmatpush.msra.mxu0 0.0
        %680 = vmatpush.msra.mxu0 0.0
        %681 = vmatpush.msra.mxu0 0.0
        %682 = vmatpush.msra.mxu0 0.0
        %683 = vmatpush.msra.mxu0 0.0
        %684 = vmatpush.msra.mxu0 0.0
        %685 = vmatpush.msra.mxu0 0.0
        %686 = vmatpush.msra.mxu0 0.0
        %687 = vmatpush.msra.mxu0 0.0
        %688 = vmatpush.msra.mxu0 0.0
        %689 = vmatpush.msra.mxu0 %v669
        %690 = vmatpush.msra.mxu0 %v668
        %691 = vmatpush.msra.mxu0 %v667
        %692 = vmatpush.msra.mxu0 %v666
        %693 = vmatmul.f32.gmra.mxu0 %v675
        %v694 = vpop.f32.mrf.mxu0
        %v695 = vadd.f32 %v672, %v694
        %696 = vdwg.mxu0
        %697 = vst [vmem:[%s7] sm:$0xff] %v695
      $region56: #{model_forward.1} parent=47 // pred_fallthru
        _
      // Predicated region
      $region57: #{model_forward.1} parent=47 // pred_check
        %p698 = pneg %p183
      $region58: #{model_forward.1} parent=47 // pred_check_branch
        %700 = sbr.rel (%p698) target = $region60
      $region59: #{model_forward.1} parent=47 // pred_region
        _
      $region60: #{model_forward.1} parent=47 // pred_fallthru
        _
      // Predicated region
      $region61: #{model_forward.1} parent=47 // pred_check
        %p701 = pneg %p183
      $region62: #{model_forward.1} parent=47 // pred_check_branch
        %703 = sbr.rel (%p701) target = $region64
      $region63: #{model_forward.1} parent=47 // pred_region
        _
      $region64: #{model_forward.1} parent=47 // pred_fallthru
        _
    $region48: #{model_forward.1} parent=5 // pred_fallthru
      _
    %p704 = scmp.le.s32.totalorder 2, %s13
    // Predicated region
    $region65: #{model_forward.1} parent=5 // pred_check
      %p705 = pneg %p704
    $region66: #{model_forward.1} parent=5 // pred_check_branch
      %707 = sbr.rel (%p705) target = $region68
    $region67: #{model_forward.1} parent=5 // pred_region
      %s708 = ssub.s32 %s13, 2
    $region68: #{model_forward.1} parent=5 // pred_fallthru
      _
  $region6: #{model_forward.1} parent=0 // loop_footer
    %s17 = sadd.s32 1, %s13
  $region7: #{model_forward.1} parent=0 // loop_footer_branch
    %12 = sbr.rel target = $region3
  $region8: #{model_forward.1} parent=0 // loop_exit
    _

</llo_original>
